<compile_context>
chip_gen: v5e
topology: v5e:2x2
jax: 0.10.0
libtpu: 0.0.40
codegen_flags: <defaults>
</compile_context>

<pallas_src>
import jax
import jax.numpy as jnp
from jax.experimental import pallas as pl
from jax.experimental.pallas import tpu as pltpu


def _mlp_kernel(x_ref, w1_ref, b1_ref, w2_ref, b2_ref, w3_ref, b3_ref, o_ref):
    x = x_ref[...]
    # fc1 + relu
    h1 = jnp.dot(x, w1_ref[...], preferred_element_type=jnp.float32)
    h1 = jnp.maximum(h1 + b1_ref[...], 0.0)
    # fc2 + relu
    h2 = jnp.dot(h1, w2_ref[...], preferred_element_type=jnp.float32)
    h2 = jnp.maximum(h2 + b2_ref[...], 0.0)
    # fc3 + sigmoid (bias is an SMEM scalar)
    z = jnp.dot(h2, w3_ref[...], preferred_element_type=jnp.float32)
    z = z + b3_ref[0, 0]
    o_ref[...] = jax.nn.sigmoid(z).astype(o_ref.dtype)


def simple_feedforward_nn(x, w1, b1, w2, b2, w3, b3, *, block_rows=512):
    """Fused forward pass. x: (B, input_size) f32 -> (B, 1) f32."""
    B, d_in = x.shape
    h1 = w1.shape[1]
    h2 = w2.shape[1]
    d_out = w3.shape[1]

    # Batch tile: sublane-aligned, capped at block_rows (512 by default).
    tm = min(block_rows, B)
    tm = max(8, -(-tm // 8) * 8)
    b_pad = -(-B // tm) * tm
    if b_pad != B:
        x = jnp.pad(x, ((0, b_pad - B), (0, 0)))
    grid = (b_pad // tm,)

    # Small weights/biases: constant block index -> fetched once, VMEM-resident.
    def const_spec(a):
        return pl.BlockSpec(a.shape, lambda i: (0,) * a.ndim,
                            memory_space=pltpu.VMEM)

    flops = 2 * b_pad * (d_in * h1 + h1 * h2 + h2 * d_out)
    bytes_accessed = (
        b_pad * (d_in + d_out) * 4
        + (d_in * h1 + h1 + h1 * h2 + h2 + h2 * d_out + d_out) * 4)

    out = pl.pallas_call(
        _mlp_kernel,
        out_shape=jax.ShapeDtypeStruct((b_pad, d_out), jnp.float32),
        grid=grid,
        in_specs=[
            pl.BlockSpec((tm, d_in), lambda i: (i, 0),
                         memory_space=pltpu.VMEM),   # streamed x tiles
            const_spec(w1), const_spec(b1),
            const_spec(w2), const_spec(b2),
            const_spec(w3),
            pl.BlockSpec((1, 1), lambda i: (0, 0),
                         memory_space=pltpu.SMEM),   # fc3 bias as SMEM scalar
        ],
        out_specs=pl.BlockSpec((tm, d_out), lambda i: (i, 0),
                               memory_space=pltpu.VMEM),
        compiler_params=pltpu.CompilerParams(
            dimension_semantics=("parallel",)),       # megacore shard on v7x
        cost_estimate=pl.CostEstimate(
            flops=flops, transcendentals=b_pad, bytes_accessed=bytes_accessed),
    )(x, w1, b1, w2, b2, w3, b3)

    return out[:B]


def _init_linear(key, fan_in, fan_out):
    """PyTorch nn.Linear default init: U(-1/sqrt(fan_in), 1/sqrt(fan_in)).
    Weight returned already transposed to (fan_in, fan_out)."""
    kw, kb = jax.random.split(key)
    bound = 1.0 / (fan_in ** 0.5)
    w = jax.random.uniform(kw, (fan_in, fan_out), jnp.float32, -bound, bound)
    b = jax.random.uniform(kb, (1, fan_out), jnp.float32, -bound, bound)
    return w, b


if __name__ == "__main__":
    input_size, hidden_size_1, hidden_size_2 = 16, 32, 32

    key = jax.random.PRNGKey(0)
    kx, k1, k2, k3, kx2 = jax.random.split(key, 5)

    w1, b1 = _init_linear(k1, input_size, hidden_size_1)
    w2, b2 = _init_linear(k2, hidden_size_1, hidden_size_2)
    w3, b3 = _init_linear(k3, hidden_size_2, 1)

    def ref_fwd(xv):
        h = jnp.maximum(xv @ w1 + b1, 0.0)
        h = jnp.maximum(h @ w2 + b2, 0.0)
        return jax.nn.sigmoid(h @ w3 + b3)

    # 1) small single-tile case (batch=8).
    x_small = jax.random.normal(kx, (8, input_size), jnp.float32)
    out_small = jax.block_until_ready(
        simple_feedforward_nn(x_small, w1, b1, w2, b2, w3, b3))
    assert out_small.shape == (8, 1)
    assert jnp.allclose(out_small, ref_fwd(x_small), atol=1e-5), \
        "mismatch vs reference (small batch)"

    # 2) multi-tile + padded-batch case exercising the streamed grid pipeline.
    x_big = jax.random.normal(kx2, (300, input_size), jnp.float32)
    out_big = jax.block_until_ready(
        simple_feedforward_nn(x_big, w1, b1, w2, b2, w3, b3, block_rows=128))
    assert out_big.shape == (300, 1)
    assert jnp.allclose(out_big, ref_fwd(x_big), atol=1e-5), \
        "mismatch vs reference (gridded batch)"

    print("KERNEL_OK")
</pallas_src>

<mosaic_0001>
module attributes {stable_mosaic.version = 11 : i64} {
  func.func @_mlp_kernel(%arg0: i32, %arg1: memref<8x16xf32, #tpu.memory_space<vmem>>, %arg2: memref<16x32xf32, #tpu.memory_space<vmem>>, %arg3: memref<1x32xf32, #tpu.memory_space<vmem>>, %arg4: memref<32x32xf32, #tpu.memory_space<vmem>>, %arg5: memref<1x32xf32, #tpu.memory_space<vmem>>, %arg6: memref<32x1xf32, #tpu.memory_space<vmem>>, %arg7: memref<1x1xf32, #tpu.memory_space<smem>>, %arg8: memref<8x1xf32, #tpu.memory_space<vmem>>) attributes {dimension_semantics = [#tpu.dimension_semantics<parallel>], iteration_bounds = array<i64: 1>, scalar_prefetch = 0 : i64, scratch_operands = 0 : i64, tpu.core_type = #tpu.core_type<tc>, window_params = [{transform_indices = @transform_0, window_bounds = array<i64: 8, 16>}, {pipeline_mode = #tpu.pipeline_mode<synchronous>, transform_indices = @transform_1, window_bounds = array<i64: 16, 32>}, {pipeline_mode = #tpu.pipeline_mode<synchronous>, transform_indices = @transform_2, window_bounds = array<i64: 1, 32>}, {pipeline_mode = #tpu.pipeline_mode<synchronous>, transform_indices = @transform_3, window_bounds = array<i64: 32, 32>}, {pipeline_mode = #tpu.pipeline_mode<synchronous>, transform_indices = @transform_4, window_bounds = array<i64: 1, 32>}, {pipeline_mode = #tpu.pipeline_mode<synchronous>, transform_indices = @transform_5, window_bounds = array<i64: 32, 1>}, {transform_indices = @transform_6, window_bounds = array<i64: 1, 1>}, {transform_indices = @transform_7, window_bounds = array<i64: 8, 1>}]} {
    %c0 = arith.constant 0 : index
    %c0_0 = arith.constant 0 : index
    %0 = vector.load %arg1[%c0, %c0_0] : memref<8x16xf32, #tpu.memory_space<vmem>>, vector<8x16xf32>
    %c0_1 = arith.constant 0 : index
    %c0_2 = arith.constant 0 : index
    %1 = vector.load %arg2[%c0_1, %c0_2] : memref<16x32xf32, #tpu.memory_space<vmem>>, vector<16x32xf32>
    %cst = arith.constant dense<0.000000e+00> : vector<8x32xf32>
    %2 = tpu.matmul %0, %1, %cst {dimension_numbers = #tpu.dot_dimension_numbers<[1], [0], [0], [1], [0, 0, 1, 1], [], []>} : vector<8x16xf32>, vector<16x32xf32>, vector<8x32xf32> -> vector<8x32xf32>
    %c0_3 = arith.constant 0 : index
    %c0_4 = arith.constant 0 : index
    %3 = vector.load %arg3[%c0_3, %c0_4] : memref<1x32xf32, #tpu.memory_space<vmem>>, vector<1x32xf32>
    %4 = vector.broadcast %3 : vector<1x32xf32> to vector<8x32xf32>
    %5 = arith.addf %2, %4 : vector<8x32xf32>
    %cst_5 = arith.constant 0.000000e+00 : f32
    %6 = vector.broadcast %cst_5 : f32 to vector<8x32xf32>
    %7 = arith.maximumf %5, %6 : vector<8x32xf32>
    %c0_6 = arith.constant 0 : index
    %c0_7 = arith.constant 0 : index
    %8 = vector.load %arg4[%c0_6, %c0_7] : memref<32x32xf32, #tpu.memory_space<vmem>>, vector<32x32xf32>
    %cst_8 = arith.constant dense<0.000000e+00> : vector<8x32xf32>
    %9 = tpu.matmul %7, %8, %cst_8 {dimension_numbers = #tpu.dot_dimension_numbers<[1], [0], [0], [1], [0, 0, 1, 1], [], []>} : vector<8x32xf32>, vector<32x32xf32>, vector<8x32xf32> -> vector<8x32xf32>
    %c0_9 = arith.constant 0 : index
    %c0_10 = arith.constant 0 : index
    %10 = vector.load %arg5[%c0_9, %c0_10] : memref<1x32xf32, #tpu.memory_space<vmem>>, vector<1x32xf32>
    %11 = vector.broadcast %10 : vector<1x32xf32> to vector<8x32xf32>
    %12 = arith.addf %9, %11 : vector<8x32xf32>
    %cst_11 = arith.constant 0.000000e+00 : f32
    %13 = vector.broadcast %cst_11 : f32 to vector<8x32xf32>
    %14 = arith.maximumf %12, %13 : vector<8x32xf32>
    %c0_12 = arith.constant 0 : index
    %c0_13 = arith.constant 0 : index
    %15 = vector.load %arg6[%c0_12, %c0_13] : memref<32x1xf32, #tpu.memory_space<vmem>>, vector<32x1xf32>
    %cst_14 = arith.constant dense<0.000000e+00> : vector<8x1xf32>
    %16 = tpu.matmul %14, %15, %cst_14 {dimension_numbers = #tpu.dot_dimension_numbers<[1], [0], [0], [1], [0, 0, 1, 1], [], []>} : vector<8x32xf32>, vector<32x1xf32>, vector<8x1xf32> -> vector<8x1xf32>
    %c0_15 = arith.constant 0 : index
    %c0_16 = arith.constant 0 : index
    %17 = memref.load %arg7[%c0_15, %c0_16] : memref<1x1xf32, #tpu.memory_space<smem>>
    %18 = vector.broadcast %17 : f32 to vector<8x1xf32>
    %19 = arith.addf %16, %18 : vector<8x1xf32>
    %20 = arith.negf %19 : vector<8x1xf32>
    %21 = math.exp %20 : vector<8x1xf32>
    %cst_17 = arith.constant 1.000000e+00 : f32
    %22 = vector.broadcast %cst_17 : f32 to vector<8x1xf32>
    %23 = arith.addf %22, %21 : vector<8x1xf32>
    %24 = arith.divf %22, %23 : vector<8x1xf32>
    %c0_18 = arith.constant 0 : index
    %c0_19 = arith.constant 0 : index
    %25 = vector.load %arg8[%c0_18, %c0_19] : memref<8x1xf32, #tpu.memory_space<vmem>>, vector<8x1xf32>
    tpu.vector_store %arg8[%c0_18, %c0_19], %24 {strides = array<i32>} : memref<8x1xf32, #tpu.memory_space<vmem>>, vector<8x1xf32>,
    return
  }
  func.func @transform_0(%arg0: i32) -> (i32, i32) {
    %c0_i32 = arith.constant 0 : i32
    %c0_i32_0 = arith.constant 0 : i32
    return %arg0, %c0_i32 : i32, i32
  }
  func.func @transform_1(%arg0: i32) -> (i32, i32) {
    %c0_i32 = arith.constant 0 : i32
    %c0_i32_0 = arith.constant 0 : i32
    %c0_i32_1 = arith.constant 0 : i32
    return %c0_i32, %c0_i32_0 : i32, i32
  }
  func.func @transform_2(%arg0: i32) -> (i32, i32) {
    %c0_i32 = arith.constant 0 : i32
    %c0_i32_0 = arith.constant 0 : i32
    %c0_i32_1 = arith.constant 0 : i32
    return %c0_i32, %c0_i32_0 : i32, i32
  }
  func.func @transform_3(%arg0: i32) -> (i32, i32) {
    %c0_i32 = arith.constant 0 : i32
    %c0_i32_0 = arith.constant 0 : i32
    %c0_i32_1 = arith.constant 0 : i32
    return %c0_i32, %c0_i32_0 : i32, i32
  }
  func.func @transform_4(%arg0: i32) -> (i32, i32) {
    %c0_i32 = arith.constant 0 : i32
    %c0_i32_0 = arith.constant 0 : i32
    %c0_i32_1 = arith.constant 0 : i32
    return %c0_i32, %c0_i32_0 : i32, i32
  }
  func.func @transform_5(%arg0: i32) -> (i32, i32) {
    %c0_i32 = arith.constant 0 : i32
    %c0_i32_0 = arith.constant 0 : i32
    %c0_i32_1 = arith.constant 0 : i32
    return %c0_i32, %c0_i32_0 : i32, i32
  }
  func.func @transform_6(%arg0: i32) -> (i32, i32) {
    %c0_i32 = arith.constant 0 : i32
    %c0_i32_0 = arith.constant 0 : i32
    %c0_i32_1 = arith.constant 0 : i32
    return %c0_i32, %c0_i32_0 : i32, i32
  }
  func.func @transform_7(%arg0: i32) -> (i32, i32) {
    %c0_i32 = arith.constant 0 : i32
    %c0_i32_0 = arith.constant 0 : i32
    return %arg0, %c0_i32 : i32, i32
  }
}

</mosaic_0001>

<llo_original>
// kernel: tpu_custom_call.1
$region0: #{tpu_custom_call.1}
  #allocation0 [shape = 'u32[]', space=smem, size = 0x4, offset = 0x4, fixed_abs, tag = 'smem constant byte address 0x4 - core index']
  #allocation1 [shape = 'u32[72,128]{1,0:T(1,128)}', space=vmem, size = 0x9000, scoped, tag = 'internal scratch']
  #allocation2 [shape = 'f32[1,1]{1,0:T(1,128)S(6)}', space=smem, size = 0x200, scoped, tag = 'scoped memory for tpu_custom_call.1']
  %s0 = inlined_call_operand.hbm [shape: f32[8,16], index: 0, kind: input, shape index: {}]
  %s1 = inlined_call_operand.hbm [shape: f32[16,32], index: 1, kind: input, shape index: {}]
  %s2 = inlined_call_operand.vmem [shape: f32[1,32], index: 2, kind: input, shape index: {}]
  %s3 = inlined_call_operand.vmem [shape: f32[32,32], index: 3, kind: input, shape index: {}]
  %s4 = inlined_call_operand.vmem [shape: f32[1,32], index: 4, kind: input, shape index: {}]
  %s5 = inlined_call_operand.vmem [shape: f32[32,1], index: 5, kind: input, shape index: {}]
  %s6 = inlined_call_operand.<no memory space> [shape: f32[1,1], index: 6, kind: input, shape index: {}]
  %s7 = inlined_call_operand.vmem [shape: f32[8,1], index: 7, kind: output, shape index: {}]
  %s8 = sld [smem:[#allocation0]]
  $region46: #{tpu_custom_call.1} parent=0
    _
  %s10 = ssub.s32 1, %s8
  %s11 = scalar_select 0, %s10, %s8
  %12 = sst [smem:[#allocation2]] %s6
  $region1: #{tpu_custom_call.1} parent=0
    #allocation3 [shape = 'u8[4096]{0}', space=vmem, size = 0x1000, scoped, tag = 'input window, operand 0, single buffered']
    #allocation4 [shape = 's32[1]{0}', space=sflag, size = 0x4, scoped, tag = 'scoped memory for tpu_custom_call.1']
    #allocation5 [shape = 'u8[8192]{0}', space=vmem, size = 0x2000, scoped, tag = 'input window, operand 1, single buffered']
    #allocation6 [shape = 's32[1]{0}', space=sflag, size = 0x4, scoped, tag = 'scoped memory for tpu_custom_call.1']
    %13 = vsyncpa [#allocation4], 0
    %14 = vsyncpa [#allocation6], 0
    // Predicated region
    $region2: #{tpu_custom_call.1} parent=1 // pred_check
      _
    $region3: #{tpu_custom_call.1} parent=1 // pred_check_branch
      %16 = sbr.rel (0) target = $region5
    $region4: #{tpu_custom_call.1} parent=1 // pred_region
      %18 = vsyncadd [#allocation4], 0
      %s20 = sshll.u32 %s0, 4
      %s21 = int_to_ptr.hbm [resolvable:$true] %s20
      %s22 = sshll.u32 [#allocation3], 4
      %s23 = int_to_ptr.vmem [resolvable:$true] %s22
      %25 = dma.hbm_to_vmem [thread:$0]  %s21, 128, %s23, [#allocation4]
    $region5: #{tpu_custom_call.1} parent=1 // pred_fallthru
      _
    // Predicated region
    $region6: #{tpu_custom_call.1} parent=1 // pred_check
      _
    $region7: #{tpu_custom_call.1} parent=1 // pred_check_branch
      %27 = sbr.rel (0) target = $region9
    $region8: #{tpu_custom_call.1} parent=1 // pred_region
      %29 = vsyncadd [#allocation6], 0
      %s30 = sshll.u32 %s1, 4
      %s31 = int_to_ptr.hbm [resolvable:$true] %s30
      %s32 = sshll.u32 [#allocation5], 4
      %s33 = int_to_ptr.vmem [resolvable:$true] %s32
      %38 = dma.hbm_to_vmem [thread:$0]  %s31, 256, %s33, [#allocation6], 128, 128, 8
    $region9: #{tpu_custom_call.1} parent=1 // pred_fallthru
      _
    // Predicated region
    $region10: #{tpu_custom_call.1} parent=1 // pred_check
      _
    $region11: #{tpu_custom_call.1} parent=1 // pred_check_branch
      %40 = sbr.rel (0) target = $region13
    $region12: #{tpu_custom_call.1} parent=1 // pred_region
      _
    $region13: #{tpu_custom_call.1} parent=1 // pred_fallthru
      _
    // Predicated region
    $region14: #{tpu_custom_call.1} parent=1 // pred_check
      _
    $region15: #{tpu_custom_call.1} parent=1 // pred_check_branch
      %42 = sbr.rel (0) target = $region17
    $region16: #{tpu_custom_call.1} parent=1 // pred_region
      _
    $region17: #{tpu_custom_call.1} parent=1 // pred_fallthru
      _
    // Predicated region
    $region18: #{tpu_custom_call.1} parent=1 // pred_check
      _
    $region19: #{tpu_custom_call.1} parent=1 // pred_check_branch
      %44 = sbr.rel (0) target = $region21
    $region20: #{tpu_custom_call.1} parent=1 // pred_region
      _
    $region21: #{tpu_custom_call.1} parent=1 // pred_fallthru
      _
    // Predicated region
    $region22: #{tpu_custom_call.1} parent=1 // pred_check
      _
    $region23: #{tpu_custom_call.1} parent=1 // pred_check_branch
      %46 = sbr.rel (0) target = $region25
    $region24: #{tpu_custom_call.1} parent=1 // pred_region
      _
    $region25: #{tpu_custom_call.1} parent=1 // pred_fallthru
      _
    // Predicated region
    $region26: #{tpu_custom_call.1} parent=1 // pred_check
      _
    $region27: #{tpu_custom_call.1} parent=1 // pred_check_branch
      %48 = sbr.rel (0) target = $region29
    $region28: #{tpu_custom_call.1} parent=1 // pred_region
      _
    $region29: #{tpu_custom_call.1} parent=1 // pred_fallthru
      _
    // Predicated region
    $region30: #{tpu_custom_call.1} parent=1 // pred_check
      _
    $region31: #{tpu_custom_call.1} parent=1 // pred_check_branch
      %50 = sbr.rel (0) target = $region33
    $region32: #{tpu_custom_call.1} parent=1 // pred_region
      %52 = dma.done [#allocation4], 128
    $region33: #{tpu_custom_call.1} parent=1 // pred_fallthru
      _
    // Predicated region
    $region34: #{tpu_custom_call.1} parent=1 // pred_check
      _
    $region35: #{tpu_custom_call.1} parent=1 // pred_check_branch
      %54 = sbr.rel (0) target = $region37
    $region36: #{tpu_custom_call.1} parent=1 // pred_region
      %56 = dma.done [#allocation6], 256
    $region37: #{tpu_custom_call.1} parent=1 // pred_fallthru
      _
    %v57 = vld [vmem:[#allocation3] sm:$0xff]
    %v58 = vld [vmem:[#allocation5] sm:$0xff]
    %v59 = vld [vmem:[#allocation5 + $0x8] sm:$0xff]
    %v60 = vld [vmem:[%s2] sm:$0x1]
    %v62 = vperm.slane %v60, 0
    %vm64 = vcmask 130048
    %v66 = vsel %vm64, %v57, 0
    %68 = vmatpush.msra.mxu0 0.0
    %69 = vmatpush.msra.mxu0 0.0
    %70 = vmatpush.msra.mxu0 0.0
    %71 = vmatpush.msra.mxu0 0.0
    %72 = vmatpush.msra.mxu0 0.0
    %73 = vmatpush.msra.mxu0 0.0
    %74 = vmatpush.msra.mxu0 0.0
    %75 = vmatpush.msra.mxu0 0.0
    %76 = vmatpush.msra.mxu0 0.0
    %77 = vmatpush.msra.mxu0 0.0
    %78 = vmatpush.msra.mxu0 0.0
    %79 = vmatpush.msra.mxu0 0.0
    %80 = vmatpush.msra.mxu0 0.0
    %81 = vmatpush.msra.mxu0 0.0
    %82 = vmatpush.msra.mxu0 %v59
    %83 = vmatpush.msra.mxu0 %v58
    %84 = vmatmul.f32.gmra.mxu0 %v66
    %v85 = vpop.f32.mrf.mxu0
    %v86 = vadd.f32 %v62, %v85
    %87 = vdwg.mxu0
    %v88 = vmax.f32 %v86, 0.0
    %v89 = vld [vmem:[%s3] sm:$0xff]
    %v90 = vld [vmem:[%s3 + $0x8] sm:$0xff]
    %v91 = vld [vmem:[%s3 + $0x10] sm:$0xff]
    %v92 = vld [vmem:[%s3 + $0x18] sm:$0xff]
    %v93 = vld [vmem:[%s4] sm:$0x1]
    %v95 = vperm.slane %v93, 0
    %vm97 = vcmask 261120
    %v99 = vsel %vm97, %v88, 0
    %101 = vmatpush.msra.mxu0 0.0
    %102 = vmatpush.msra.mxu0 0.0
    %103 = vmatpush.msra.mxu0 0.0
    %104 = vmatpush.msra.mxu0 0.0
    %105 = vmatpush.msra.mxu0 0.0
    %106 = vmatpush.msra.mxu0 0.0
    %107 = vmatpush.msra.mxu0 0.0
    %108 = vmatpush.msra.mxu0 0.0
    %109 = vmatpush.msra.mxu0 0.0
    %110 = vmatpush.msra.mxu0 0.0
    %111 = vmatpush.msra.mxu0 0.0
    %112 = vmatpush.msra.mxu0 0.0
    %113 = vmatpush.msra.mxu0 %v92
    %114 = vmatpush.msra.mxu0 %v91
    %115 = vmatpush.msra.mxu0 %v90
    %116 = vmatpush.msra.mxu0 %v89
    %117 = vmatmul.f32.gmra.mxu0 %v99
    %v118 = vpop.f32.mrf.mxu0
    %v119 = vadd.f32 %v95, %v118
    %120 = vdwg.mxu0
    %v121 = vmax.f32 %v119, 0.0
    %v122 = vld [vmem:[%s5] sm:$0xff]
    %v123 = vld [vmem:[%s5 + $0x8] sm:$0xff]
    %v124 = vld [vmem:[%s5 + $0x10] sm:$0xff]
    %v125 = vld [vmem:[%s5 + $0x18] sm:$0xff]
    %s126 = sld [smem:[#allocation2]]
    %v127 = vstv %s126
    %v129 = vsel %vm97, %v121, 0
    %131 = vmatpush.msra.mxu0 0.0
    %132 = vmatpush.msra.mxu0 0.0
    %133 = vmatpush.msra.mxu0 0.0
    %134 = vmatpush.msra.mxu0 0.0
    %135 = vmatpush.msra.mxu0 0.0
    %136 = vmatpush.msra.mxu0 0.0
    %137 = vmatpush.msra.mxu0 0.0
    %138 = vmatpush.msra.mxu0 0.0
    %139 = vmatpush.msra.mxu0 0.0
    %140 = vmatpush.msra.mxu0 0.0
    %141 = vmatpush.msra.mxu0 0.0
    %142 = vmatpush.msra.mxu0 0.0
    %143 = vmatpush.msra.mxu0 %v125
    %144 = vmatpush.msra.mxu0 %v124
    %145 = vmatpush.msra.mxu0 %v123
    %146 = vmatpush.msra.mxu0 %v122
    %147 = vmatmul.f32.gmra.mxu0 %v129
    %v148 = vpop.f32.mrf.mxu0
    %v149 = vadd.f32 %v127, %v148
    %150 = vdwg.mxu0
    %v151 = vxor.u32 %v149, 2147483648
    %v152 = vmul.f32 %v151, 1.442695
    %v153 = vpow.pop %v152
    %v154 = vadd.f32 %v153, 1.0
    %v155 = vrcp.pop %v154
    %v156 = vmul.f32 %v154, %v155
    %v157 = vsub.f32 1.0, %v156
    %v158 = vmul.f32 %v155, %v157
    %v159 = vadd.f32 %v155, %v158
    %vm160 = vweird.f32 %v154
    %vm161 = vweird.f32 %v155
    %vm162 = vmor %vm160, %vm161
    %v163 = vsel %vm162, %v155, %v159
    %v164 = vand.u32 2147483647, %v154
    %vm165 = vcmp.eq.f32.partialorder %v164, 8.507059e+37
    %v166 = vand.u32 %v154, 2147483648
    %v167 = vor.u32 1.1754944e-38, %v166
    %v168 = vsel %vm165, %v167, %v163
    %v169 = vmul.f32 1.0, %v168
    %vm170 = vcmask 7168
    %171 = vst.msk [vmem:[%s7] sm:$0xff] %vm170, %v169
    // Predicated region
    $region38: #{tpu_custom_call.1} parent=1 // pred_check
      _
    $region39: #{tpu_custom_call.1} parent=1 // pred_check_branch
      %173 = sbr.rel (0) target = $region41
    $region40: #{tpu_custom_call.1} parent=1 // pred_region
      _
    $region41: #{tpu_custom_call.1} parent=1 // pred_fallthru
      _
    // Predicated region
    $region42: #{tpu_custom_call.1} parent=1 // pred_check
      _
    $region43: #{tpu_custom_call.1} parent=1 // pred_check_branch
      %175 = sbr.rel (0) target = $region45
    $region44: #{tpu_custom_call.1} parent=1 // pred_region
      _
    $region45: #{tpu_custom_call.1} parent=1 // pred_fallthru
      _
    %176 = vsyncpa [#allocation4], 1
    %177 = vsyncpa [#allocation6], 1

</llo_original>
